<compile_context>
chip_gen: v7x
topology: tpu7x:2x2x1
jax: 0.10.0
libtpu: 0.0.40
codegen_flags: <defaults>
</compile_context>

<pallas_src>
import functools

import jax
import jax.numpy as jnp
from jax.experimental import pallas as pl
from jax.experimental.pallas import tpu as pltpu


def mlp_kernel(x_ref, w1_ref, b1_ref, w2_ref, b2_ref, w3_ref, b3_ref, o_ref):
    """One batch tile of the fused MLP. Weights/biases are VMEM-resident."""
    x = x_ref[...]

    # Layer 1: (TB, inp) @ (inp, 256) + (1, 256), ReLU.  f32 MXU accumulation.
    h1 = jnp.dot(x, w1_ref[...], preferred_element_type=jnp.float32) + b1_ref[...]
    h1 = jnp.maximum(h1, 0.0)

    # Layer 2: (TB, 256) @ (256, 128) + (1, 128), ReLU.  Activations stay f32.
    h2 = jnp.dot(h1, w2_ref[...], preferred_element_type=jnp.float32) + b2_ref[...]
    h2 = jnp.maximum(h2, 0.0)

    # Layer 3: (TB, 128) @ (128, out) + (1, out), stored at the TRUE output
    # width.  The masked partial store (out_dim < 128 lanes) is far cheaper
    # than 8x extra HBM writeback for this bandwidth-bound kernel.
    o = jnp.dot(h2, w3_ref[...], preferred_element_type=jnp.float32) + b3_ref[...]
    o_ref[...] = o.astype(o_ref.dtype)


def _round_up(n, m):
    return ((n + m - 1) // m) * m


def _choose_batch_tile(batch, requested=512, min_tiles=4):
    """Multiple-of-8 batch tile, capped so the grid has >= min_tiles steps."""
    tile = min(requested, _round_up(pl.cdiv(batch, min_tiles), 8))
    return max(8, _round_up(tile, 8))


@functools.partial(jax.jit, static_argnames=("batch_tile",))
def mlp_forward(x, params, *, batch_tile=None):
    w1, b1, w2, b2, w3, b3 = params
    B, inp = x.shape
    out_dim = w3.shape[1]

    if batch_tile is None:
        batch_tile = _choose_batch_tile(B)
    num_tiles = pl.cdiv(B, batch_tile)

    def resident(a):
        # Constant block index => fetched into VMEM once, resident across steps.
        return pl.BlockSpec(a.shape, lambda i: (0, 0))

    return pl.pallas_call(
        mlp_kernel,
        out_shape=jax.ShapeDtypeStruct((B, out_dim), jnp.float32),
        grid=(num_tiles,),
        in_specs=[
            pl.BlockSpec((batch_tile, inp), lambda i: (i, 0)),  # x tile (ragged last tile OK)
            resident(w1), resident(b1),
            resident(w2), resident(b2),
            resident(w3), resident(b3),
        ],
        out_specs=pl.BlockSpec((batch_tile, out_dim), lambda i: (i, 0)),
        compiler_params=pltpu.CompilerParams(
            dimension_semantics=("parallel",),
        ),
    )(x, w1, b1, w2, b2, w3, b3)


def prep_params(params, *, weights_dtype=jnp.float32):
    """One-time parameter prep, hoisted out of the per-call path.

    Optionally store the weight matrices in bf16 (v6e/v7x); biases and all
    activations stay f32 and the MXU still accumulates in f32.
    """
    w1, b1, w2, b2, w3, b3 = params
    return (w1.astype(weights_dtype), b1,
            w2.astype(weights_dtype), b2,
            w3.astype(weights_dtype), b3)


def init_params(key, inp, out):
    """Deterministic init matching nn.Linear shapes (stored transposed: (in, out))."""
    ks = jax.random.split(key, 6)

    def lin(kw, kb, fan_in, fan_out):
        bound = 1.0 / jnp.sqrt(fan_in)
        w = jax.random.uniform(kw, (fan_in, fan_out), jnp.float32, -bound, bound)
        b = jax.random.uniform(kb, (1, fan_out), jnp.float32, -bound, bound)
        return w, b

    w1, b1 = lin(ks[0], ks[1], inp, 256)
    w2, b2 = lin(ks[2], ks[3], 256, 128)
    w3, b3 = lin(ks[4], ks[5], 128, out)
    return (w1, b1, w2, b2, w3, b3)


if __name__ == "__main__":
    key = jax.random.PRNGKey(0)
    k_x, k_p = jax.random.split(key)

    # B deliberately not tile-aligned to exercise the ragged final-tile path.
    B, INP, OUT = 200, 32, 16
    x = jax.random.normal(k_x, (B, INP), jnp.float32)
    params = init_params(k_p, INP, OUT)

    y = mlp_forward(x, params)
    y = jax.block_until_ready(y)

    # Cross-check against plain-JAX reference (exact f32 forward semantics).
    w1, b1, w2, b2, w3, b3 = params
    ref = jnp.maximum(x @ w1 + b1, 0.0)
    ref = jnp.maximum(ref @ w2 + b2, 0.0)
    ref = ref @ w3 + b3
    assert y.shape == (B, OUT)
    assert jnp.allclose(y, ref, atol=1e-4, rtol=1e-4)

    print("KERNEL_OK")
</pallas_src>

<mosaic_0001>
module attributes {stable_mosaic.version = 11 : i64} {
  func.func @mlp_kernel(%arg0: i32, %arg1: memref<56x32xf32, #tpu.memory_space<vmem>>, %arg2: memref<32x256xf32, #tpu.memory_space<vmem>>, %arg3: memref<1x256xf32, #tpu.memory_space<vmem>>, %arg4: memref<256x128xf32, #tpu.memory_space<vmem>>, %arg5: memref<1x128xf32, #tpu.memory_space<vmem>>, %arg6: memref<128x16xf32, #tpu.memory_space<vmem>>, %arg7: memref<1x16xf32, #tpu.memory_space<vmem>>, %arg8: memref<56x16xf32, #tpu.memory_space<vmem>>) attributes {dimension_semantics = [#tpu.dimension_semantics<parallel>], iteration_bounds = array<i64: 4>, scalar_prefetch = 0 : i64, scratch_operands = 0 : i64, tpu.core_type = #tpu.core_type<tc>, window_params = [{transform_indices = @transform_0, window_bounds = array<i64: 56, 32>}, {pipeline_mode = #tpu.pipeline_mode<synchronous>, transform_indices = @transform_1, window_bounds = array<i64: 32, 256>}, {pipeline_mode = #tpu.pipeline_mode<synchronous>, transform_indices = @transform_2, window_bounds = array<i64: 1, 256>}, {pipeline_mode = #tpu.pipeline_mode<synchronous>, transform_indices = @transform_3, window_bounds = array<i64: 256, 128>}, {pipeline_mode = #tpu.pipeline_mode<synchronous>, transform_indices = @transform_4, window_bounds = array<i64: 1, 128>}, {pipeline_mode = #tpu.pipeline_mode<synchronous>, transform_indices = @transform_5, window_bounds = array<i64: 128, 16>}, {pipeline_mode = #tpu.pipeline_mode<synchronous>, transform_indices = @transform_6, window_bounds = array<i64: 1, 16>}, {transform_indices = @transform_7, window_bounds = array<i64: 56, 16>}]} {
    %c0 = arith.constant 0 : index
    %c0_0 = arith.constant 0 : index
    %0 = vector.load %arg1[%c0, %c0_0] : memref<56x32xf32, #tpu.memory_space<vmem>>, vector<56x32xf32>
    %c0_1 = arith.constant 0 : index
    %c0_2 = arith.constant 0 : index
    %1 = vector.load %arg2[%c0_1, %c0_2] : memref<32x256xf32, #tpu.memory_space<vmem>>, vector<32x256xf32>
    %cst = arith.constant dense<0.000000e+00> : vector<56x256xf32>
    %2 = tpu.matmul %0, %1, %cst {dimension_numbers = #tpu.dot_dimension_numbers<[1], [0], [0], [1], [0, 0, 1, 1], [], []>} : vector<56x32xf32>, vector<32x256xf32>, vector<56x256xf32> -> vector<56x256xf32>
    %c0_3 = arith.constant 0 : index
    %c0_4 = arith.constant 0 : index
    %3 = vector.load %arg3[%c0_3, %c0_4] : memref<1x256xf32, #tpu.memory_space<vmem>>, vector<1x256xf32>
    %4 = vector.broadcast %3 : vector<1x256xf32> to vector<56x256xf32>
    %5 = arith.addf %2, %4 : vector<56x256xf32>
    %cst_5 = arith.constant 0.000000e+00 : f32
    %6 = vector.broadcast %cst_5 : f32 to vector<56x256xf32>
    %7 = arith.maximumf %5, %6 : vector<56x256xf32>
    %c0_6 = arith.constant 0 : index
    %c0_7 = arith.constant 0 : index
    %8 = vector.load %arg4[%c0_6, %c0_7] : memref<256x128xf32, #tpu.memory_space<vmem>>, vector<256x128xf32>
    %cst_8 = arith.constant dense<0.000000e+00> : vector<56x128xf32>
    %9 = tpu.matmul %7, %8, %cst_8 {dimension_numbers = #tpu.dot_dimension_numbers<[1], [0], [0], [1], [0, 0, 1, 1], [], []>} : vector<56x256xf32>, vector<256x128xf32>, vector<56x128xf32> -> vector<56x128xf32>
    %c0_9 = arith.constant 0 : index
    %c0_10 = arith.constant 0 : index
    %10 = vector.load %arg5[%c0_9, %c0_10] : memref<1x128xf32, #tpu.memory_space<vmem>>, vector<1x128xf32>
    %11 = vector.broadcast %10 : vector<1x128xf32> to vector<56x128xf32>
    %12 = arith.addf %9, %11 : vector<56x128xf32>
    %cst_11 = arith.constant 0.000000e+00 : f32
    %13 = vector.broadcast %cst_11 : f32 to vector<56x128xf32>
    %14 = arith.maximumf %12, %13 : vector<56x128xf32>
    %c0_12 = arith.constant 0 : index
    %c0_13 = arith.constant 0 : index
    %15 = vector.load %arg6[%c0_12, %c0_13] : memref<128x16xf32, #tpu.memory_space<vmem>>, vector<128x16xf32>
    %cst_14 = arith.constant dense<0.000000e+00> : vector<56x16xf32>
    %16 = tpu.matmul %14, %15, %cst_14 {dimension_numbers = #tpu.dot_dimension_numbers<[1], [0], [0], [1], [0, 0, 1, 1], [], []>} : vector<56x128xf32>, vector<128x16xf32>, vector<56x16xf32> -> vector<56x16xf32>
    %c0_15 = arith.constant 0 : index
    %c0_16 = arith.constant 0 : index
    %17 = vector.load %arg7[%c0_15, %c0_16] : memref<1x16xf32, #tpu.memory_space<vmem>>, vector<1x16xf32>
    %18 = vector.broadcast %17 : vector<1x16xf32> to vector<56x16xf32>
    %19 = arith.addf %16, %18 : vector<56x16xf32>
    %c0_17 = arith.constant 0 : index
    %c0_18 = arith.constant 0 : index
    %20 = vector.load %arg8[%c0_17, %c0_18] : memref<56x16xf32, #tpu.memory_space<vmem>>, vector<56x16xf32>
    tpu.vector_store %arg8[%c0_17, %c0_18], %19 {strides = array<i32>} : memref<56x16xf32, #tpu.memory_space<vmem>>, vector<56x16xf32>,
    return
  }
  func.func @transform_0(%arg0: i32) -> (i32, i32) {
    %c0_i32 = arith.constant 0 : i32
    %c0_i32_0 = arith.constant 0 : i32
    return %arg0, %c0_i32 : i32, i32
  }
  func.func @transform_1(%arg0: i32) -> (i32, i32) {
    %c0_i32 = arith.constant 0 : i32
    %c0_i32_0 = arith.constant 0 : i32
    %c0_i32_1 = arith.constant 0 : i32
    return %c0_i32, %c0_i32_0 : i32, i32
  }
  func.func @transform_2(%arg0: i32) -> (i32, i32) {
    %c0_i32 = arith.constant 0 : i32
    %c0_i32_0 = arith.constant 0 : i32
    %c0_i32_1 = arith.constant 0 : i32
    return %c0_i32, %c0_i32_0 : i32, i32
  }
  func.func @transform_3(%arg0: i32) -> (i32, i32) {
    %c0_i32 = arith.constant 0 : i32
    %c0_i32_0 = arith.constant 0 : i32
    %c0_i32_1 = arith.constant 0 : i32
    return %c0_i32, %c0_i32_0 : i32, i32
  }
  func.func @transform_4(%arg0: i32) -> (i32, i32) {
    %c0_i32 = arith.constant 0 : i32
    %c0_i32_0 = arith.constant 0 : i32
    %c0_i32_1 = arith.constant 0 : i32
    return %c0_i32, %c0_i32_0 : i32, i32
  }
  func.func @transform_5(%arg0: i32) -> (i32, i32) {
    %c0_i32 = arith.constant 0 : i32
    %c0_i32_0 = arith.constant 0 : i32
    %c0_i32_1 = arith.constant 0 : i32
    return %c0_i32, %c0_i32_0 : i32, i32
  }
  func.func @transform_6(%arg0: i32) -> (i32, i32) {
    %c0_i32 = arith.constant 0 : i32
    %c0_i32_0 = arith.constant 0 : i32
    %c0_i32_1 = arith.constant 0 : i32
    return %c0_i32, %c0_i32_0 : i32, i32
  }
  func.func @transform_7(%arg0: i32) -> (i32, i32) {
    %c0_i32 = arith.constant 0 : i32
    %c0_i32_0 = arith.constant 0 : i32
    return %arg0, %c0_i32 : i32, i32
  }
}

</mosaic_0001>

<llo_original>
// kernel: mlp_forward.1
$region0: #{mlp_forward.1}
  #allocation0 [shape = 'u32[]', space=smem, size = 0x4, offset = 0x4, fixed_abs, tag = 'smem constant byte address 0x4 - core index']
  #allocation1 [shape = 'u32[144,128]{1,0:T(1,128)}', space=vmem, size = 0x12000, scoped, tag = 'internal scratch']
  %s0 = inlined_call_operand.vmem [shape: f32[200,32], index: 0, kind: input, shape index: {}]
  %s1 = inlined_call_operand.vmem [shape: f32[32,256], index: 1, kind: input, shape index: {}]
  %s2 = inlined_call_operand.vmem [shape: f32[1,256], index: 2, kind: input, shape index: {}]
  %s3 = inlined_call_operand.vmem [shape: f32[256,128], index: 3, kind: input, shape index: {}]
  %s4 = inlined_call_operand.vmem [shape: f32[1,128], index: 4, kind: input, shape index: {}]
  %s5 = inlined_call_operand.vmem [shape: f32[128,16], index: 5, kind: input, shape index: {}]
  %s6 = inlined_call_operand.vmem [shape: f32[1,16], index: 6, kind: input, shape index: {}]
  %s7 = inlined_call_operand.vmem [shape: f32[200,16], index: 7, kind: output, shape index: {}]
  %s8 = sld [smem:[#allocation0]]
  $region109: #{mlp_forward.1} parent=0
    _
  %s10 = ssub.s32 1, %s8
  %s11 = scalar_select 0, %s10, %s8
  $region1: #{mlp_forward.1} parent=0
    #allocation2 [shape = 'u8[57344]{0}', space=vmem, size = 0xe000, scoped, tag = 'output window, operand 0']
    loop: start=0, step=1, limit=6
    $region2: #{mlp_forward.1} parent=1 // loop_pre_header
      _
    $region3: #{mlp_forward.1} parent=1 // loop_header
      %s13 = sphi 0, %s17
      %p14 = scmp.ge.s32.totalorder %s13, 6
      %s23 = sphi 0, %s25
      %s26 = sphi 0, %s23
      %s27 = sphi 0, %s26
      %s43 = sphi 0, %s27
      %s47 = sphi 0, %s47
      %s49 = sphi 0, %s47
      %s50 = sphi 0, %s49
      %s64 = sphi 0, %s50
      %s68 = sphi 0, %s68
      %s70 = sphi 0, %s68
      %s71 = sphi 0, %s70
      %s85 = sphi 0, %s71
      %s89 = sphi 0, %s89
      %s91 = sphi 0, %s89
      %s92 = sphi 0, %s91
      %s106 = sphi 0, %s92
      %s110 = sphi 0, %s110
      %s112 = sphi 0, %s110
      %s113 = sphi 0, %s112
      %s127 = sphi 0, %s113
      %s131 = sphi 0, %s131
      %s133 = sphi 0, %s131
      %s134 = sphi 0, %s133
      %s148 = sphi 0, %s134
      %s152 = sphi 0, %s152
      %s154 = sphi 0, %s152
      %s155 = sphi 0, %s154
      %s169 = sphi 0, %s155
      %s175 = sphi 0, %s177
      %s178 = sphi 0, %s175
      %s179 = sphi 0, %s178
      %s195 = sphi 0, %s179
    $region4: #{mlp_forward.1} parent=1 // loop_header_branch
      %16 = sbr.rel (%p14) target = $region8
    $region5: #{mlp_forward.1} parent=1 // loop_body
      %s18 = ssub.s32 %s13, 1
      %s19 = ssub.s32 %s13, 2
      %s20 = sadd.s32 %s13, 1
      %s21 = ssub.s32 %s13, %s20
      %p22 = scmp.eq.s32.totalorder %s21, 0
      %s24 = sadd.s32 %s23, 1
      %s25 = scalar_select %p22, %s23, %s24
      %p28 = pneg %p22
      %p29 = scmp.eq.s32.totalorder %s13, 3
      %p30 = por %p28, %p29
      %p31 = scmp.ne.s32.totalorder %s23, %s26
      %p32 = scmp.eq.s32.totalorder %s13, 0
      %p33 = por %p31, %p32
      %p34 = scmp.ne.s32.totalorder %s23, %s26
      %p35 = scmp.eq.s32.totalorder %s18, 3
      %p36 = por %p34, %p35
      %p37 = scmp.ne.s32.totalorder %s26, %s27
      %p38 = scmp.eq.s32.totalorder %s18, 0
      %p39 = por %p37, %p38
      %p40 = scmp.ne.s32.totalorder %s26, %s27
      %p41 = scmp.eq.s32.totalorder %s19, 3
      %p42 = por %p40, %p41
      %p44 = scmp.ne.s32.totalorder %s27, %s43
      %p45 = scmp.eq.s32.totalorder %s19, 0
      %p46 = por %p44, %p45
      %s48 = sadd.s32 %s47, 1
      %p51 = scmp.eq.s32.totalorder %s13, 3
      %p52 = scmp.ne.s32.totalorder %s47, %s49
      %p53 = scmp.eq.s32.totalorder %s13, 0
      %p54 = por %p52, %p53
      %p55 = scmp.ne.s32.totalorder %s47, %s49
      %p56 = scmp.eq.s32.totalorder %s18, 3
      %p57 = por %p55, %p56
      %p58 = scmp.ne.s32.totalorder %s49, %s50
      %p59 = scmp.eq.s32.totalorder %s18, 0
      %p60 = por %p58, %p59
      %p61 = scmp.ne.s32.totalorder %s49, %s50
      %p62 = scmp.eq.s32.totalorder %s19, 3
      %p63 = por %p61, %p62
      %p65 = scmp.ne.s32.totalorder %s50, %s64
      %p66 = scmp.eq.s32.totalorder %s19, 0
      %p67 = por %p65, %p66
      %s69 = sadd.s32 %s68, 1
      %p72 = scmp.eq.s32.totalorder %s13, 3
      %p73 = scmp.ne.s32.totalorder %s68, %s70
      %p74 = scmp.eq.s32.totalorder %s13, 0
      %p75 = por %p73, %p74
      %p76 = scmp.ne.s32.totalorder %s68, %s70
      %p77 = scmp.eq.s32.totalorder %s18, 3
      %p78 = por %p76, %p77
      %p79 = scmp.ne.s32.totalorder %s70, %s71
      %p80 = scmp.eq.s32.totalorder %s18, 0
      %p81 = por %p79, %p80
      %p82 = scmp.ne.s32.totalorder %s70, %s71
      %p83 = scmp.eq.s32.totalorder %s19, 3
      %p84 = por %p82, %p83
      %p86 = scmp.ne.s32.totalorder %s71, %s85
      %p87 = scmp.eq.s32.totalorder %s19, 0
      %p88 = por %p86, %p87
      %s90 = sadd.s32 %s89, 1
      %p93 = scmp.eq.s32.totalorder %s13, 3
      %p94 = scmp.ne.s32.totalorder %s89, %s91
      %p95 = scmp.eq.s32.totalorder %s13, 0
      %p96 = por %p94, %p95
      %p97 = scmp.ne.s32.totalorder %s89, %s91
      %p98 = scmp.eq.s32.totalorder %s18, 3
      %p99 = por %p97, %p98
      %p100 = scmp.ne.s32.totalorder %s91, %s92
      %p101 = scmp.eq.s32.totalorder %s18, 0
      %p102 = por %p100, %p101
      %p103 = scmp.ne.s32.totalorder %s91, %s92
      %p104 = scmp.eq.s32.totalorder %s19, 3
      %p105 = por %p103, %p104
      %p107 = scmp.ne.s32.totalorder %s92, %s106
      %p108 = scmp.eq.s32.totalorder %s19, 0
      %p109 = por %p107, %p108
      %s111 = sadd.s32 %s110, 1
      %p114 = scmp.eq.s32.totalorder %s13, 3
      %p115 = scmp.ne.s32.totalorder %s110, %s112
      %p116 = scmp.eq.s32.totalorder %s13, 0
      %p117 = por %p115, %p116
      %p118 = scmp.ne.s32.totalorder %s110, %s112
      %p119 = scmp.eq.s32.totalorder %s18, 3
      %p120 = por %p118, %p119
      %p121 = scmp.ne.s32.totalorder %s112, %s113
      %p122 = scmp.eq.s32.totalorder %s18, 0
      %p123 = por %p121, %p122
      %p124 = scmp.ne.s32.totalorder %s112, %s113
      %p125 = scmp.eq.s32.totalorder %s19, 3
      %p126 = por %p124, %p125
      %p128 = scmp.ne.s32.totalorder %s113, %s127
      %p129 = scmp.eq.s32.totalorder %s19, 0
      %p130 = por %p128, %p129
      %s132 = sadd.s32 %s131, 1
      %p135 = scmp.eq.s32.totalorder %s13, 3
      %p136 = scmp.ne.s32.totalorder %s131, %s133
      %p137 = scmp.eq.s32.totalorder %s13, 0
      %p138 = por %p136, %p137
      %p139 = scmp.ne.s32.totalorder %s131, %s133
      %p140 = scmp.eq.s32.totalorder %s18, 3
      %p141 = por %p139, %p140
      %p142 = scmp.ne.s32.totalorder %s133, %s134
      %p143 = scmp.eq.s32.totalorder %s18, 0
      %p144 = por %p142, %p143
      %p145 = scmp.ne.s32.totalorder %s133, %s134
      %p146 = scmp.eq.s32.totalorder %s19, 3
      %p147 = por %p145, %p146
      %p149 = scmp.ne.s32.totalorder %s134, %s148
      %p150 = scmp.eq.s32.totalorder %s19, 0
      %p151 = por %p149, %p150
      %s153 = sadd.s32 %s152, 1
      %p156 = scmp.eq.s32.totalorder %s13, 3
      %p157 = scmp.ne.s32.totalorder %s152, %s154
      %p158 = scmp.eq.s32.totalorder %s13, 0
      %p159 = por %p157, %p158
      %p160 = scmp.ne.s32.totalorder %s152, %s154
      %p161 = scmp.eq.s32.totalorder %s18, 3
      %p162 = por %p160, %p161
      %p163 = scmp.ne.s32.totalorder %s154, %s155
      %p164 = scmp.eq.s32.totalorder %s18, 0
      %p165 = por %p163, %p164
      %p166 = scmp.ne.s32.totalorder %s154, %s155
      %p167 = scmp.eq.s32.totalorder %s19, 3
      %p168 = por %p166, %p167
      %p170 = scmp.ne.s32.totalorder %s155, %s169
      %p171 = scmp.eq.s32.totalorder %s19, 0
      %p172 = por %p170, %p171
      %s173 = ssub.s32 %s13, %s20
      %p174 = scmp.eq.s32.totalorder %s173, 0
      %s176 = sadd.s32 %s175, 1
      %s177 = scalar_select %p174, %s175, %s176
      %p180 = pneg %p174
      %p181 = scmp.eq.s32.totalorder %s13, 3
      %p182 = por %p180, %p181
      %p183 = scmp.ne.s32.totalorder %s175, %s178
      %p184 = scmp.eq.s32.totalorder %s13, 0
      %p185 = por %p183, %p184
      %p186 = scmp.ne.s32.totalorder %s175, %s178
      %p187 = scmp.eq.s32.totalorder %s18, 3
      %p188 = por %p186, %p187
      %p189 = scmp.ne.s32.totalorder %s178, %s179
      %p190 = scmp.eq.s32.totalorder %s18, 0
      %p191 = por %p189, %p190
      %p192 = scmp.ne.s32.totalorder %s178, %s179
      %p193 = scmp.eq.s32.totalorder %s19, 3
      %p194 = por %p192, %p193
      %p196 = scmp.ne.s32.totalorder %s179, %s195
      %p197 = scmp.eq.s32.totalorder %s19, 0
      %p198 = por %p196, %p197
      %p199 = scmp.le.s32.totalorder 1, %s13
      %p200 = scmp.lt.s32.totalorder %s13, 5
      %p201 = pnand %p199, %p200
      %p202 = pneg %p201
      // Predicated region
      $region9: #{mlp_forward.1} parent=5 // pred_check
        _
      $region10: #{mlp_forward.1} parent=5 // pred_check_branch
        %204 = sbr.rel (%p201) target = $region12
      $region11: #{mlp_forward.1} parent=5 // pred_region
        %s205 = ssub.s32 %s13, 1
        // Predicated region
        $region13: #{mlp_forward.1} parent=11 // pred_check
          %p206 = pneg %p60
        $region14: #{mlp_forward.1} parent=11 // pred_check_branch
          %208 = sbr.rel (%p206) target = $region16
        $region15: #{mlp_forward.1} parent=11 // pred_region
          _
        $region16: #{mlp_forward.1} parent=11 // pred_fallthru
          _
        // Predicated region
        $region17: #{mlp_forward.1} parent=11 // pred_check
          %p209 = pneg %p81
        $region18: #{mlp_forward.1} parent=11 // pred_check_branch
          %211 = sbr.rel (%p209) target = $region20
        $region19: #{mlp_forward.1} parent=11 // pred_region
          _
        $region20: #{mlp_forward.1} parent=11 // pred_fallthru
          _
        // Predicated region
        $region21: #{mlp_forward.1} parent=11 // pred_check
          %p212 = pneg %p102
        $region22: #{mlp_forward.1} parent=11 // pred_check_branch
          %214 = sbr.rel (%p212) target = $region24
        $region23: #{mlp_forward.1} parent=11 // pred_region
          _
        $region24: #{mlp_forward.1} parent=11 // pred_fallthru
          _
        // Predicated region
        $region25: #{mlp_forward.1} parent=11 // pred_check
          %p215 = pneg %p123
        $region26: #{mlp_forward.1} parent=11 // pred_check_branch
          %217 = sbr.rel (%p215) target = $region28
        $region27: #{mlp_forward.1} parent=11 // pred_region
          _
        $region28: #{mlp_forward.1} parent=11 // pred_fallthru
          _
        // Predicated region
        $region29: #{mlp_forward.1} parent=11 // pred_check
          %p218 = pneg %p144
        $region30: #{mlp_forward.1} parent=11 // pred_check_branch
          %220 = sbr.rel (%p218) target = $region32
        $region31: #{mlp_forward.1} parent=11 // pred_region
          _
        $region32: #{mlp_forward.1} parent=11 // pred_fallthru
          _
        // Predicated region
        $region33: #{mlp_forward.1} parent=11 // pred_check
          %p221 = pneg %p165
        $region34: #{mlp_forward.1} parent=11 // pred_check_branch
          %223 = sbr.rel (%p221) target = $region36
        $region35: #{mlp_forward.1} parent=11 // pred_region
          _
        $region36: #{mlp_forward.1} parent=11 // pred_fallthru
          _
      $region12: #{mlp_forward.1} parent=5 // pred_fallthru
        _
      %p224 = scmp.lt.s32.totalorder %s13, 4
      // Predicated region
      $region37: #{mlp_forward.1} parent=5 // pred_check
        %p225 = pneg %p224
      $region38: #{mlp_forward.1} parent=5 // pred_check_branch
        %227 = sbr.rel (%p225) target = $region40
      $region39: #{mlp_forward.1} parent=5 // pred_region
        // Predicated region
        $region41: #{mlp_forward.1} parent=39 // pred_check
          %p228 = pneg %p33
        $region42: #{mlp_forward.1} parent=39 // pred_check_branch
          %230 = sbr.rel (%p228) target = $region44
        $region43: #{mlp_forward.1} parent=39 // pred_region
          %s231 = smul.u32 7, %s13
          %s232 = ssub.s32 25, %s231
          %p233 = scmp.lt.s32.totalorder %s232, 7
          %s234 = scalar_select %p233, %s232, 7
          %s235 = smul.u32 128, %s234
          %p236 = scmp.lt.s32.totalorder %s231, 24
          %s237 = scalar_select %p236, %s231, 24
          %s238 = smul.addr %s237, 8
          %s239 = scalar_lea.vmem %s0, %s238
          %s240 = smul.u32 7, %s13
          %s241 = ssub.s32 25, %s240
          %p242 = scmp.lt.s32.totalorder %s241, 7
          %s243 = scalar_select %p242, %s241, 7
          %s244 = smul.u32 128, %s243
        $region44: #{mlp_forward.1} parent=39 // pred_fallthru
          _
      $region40: #{mlp_forward.1} parent=5 // pred_fallthru
        _
      %p245 = scmp.le.s32.totalorder 1, %s13
      %p246 = scmp.lt.s32.totalorder %s13, 5
      %p247 = pnand %p245, %p246
      %p248 = pneg %p247
      // Predicated region
      $region45: #{mlp_forward.1} parent=5 // pred_check
        _
      $region46: #{mlp_forward.1} parent=5 // pred_check_branch
        %250 = sbr.rel (%p247) target = $region48
      $region47: #{mlp_forward.1} parent=5 // pred_region
        %s251 = ssub.s32 %s13, 1
        %s252 = smul.u32 7, %s18
        %s253 = ssub.s32 25, %s252
        %p254 = scmp.lt.s32.totalorder %s253, 7
        %s255 = scalar_select %p254, %s253, 7
        %s256 = smul.u32 128, %s255
        %p257 = scmp.lt.s32.totalorder %s252, 24
        %s258 = scalar_select %p257, %s252, 24
        %s259 = smul.addr %s258, 8
        %s260 = scalar_lea.vmem %s0, %s259
        %p261 = pneg %p39
        %p262 = pneg %p36
        %p263 = pneg %p60
        %p264 = pneg %p57
        %p265 = pneg %p81
        %p266 = pneg %p78
        %p267 = pneg %p102
        %p268 = pneg %p99
        %p269 = pneg %p123
        %p270 = pneg %p120
        %p271 = pneg %p144
        %p272 = pneg %p141
        %p273 = pneg %p165
        %p274 = pneg %p162
        %p275 = pneg %p191
        %p276 = pneg %p188
        %s277 = sand.u32 %s178, 1
        %s278 = sand.u32 %s178, 1
        %s279 = smul.addr %s278, 56
        %s280 = scalar_lea.vmem [#allocation2], %s279
        %s281 = smul.u32 7, %s18
        %s282 = ssub.s32 25, %s281
        %p283 = scmp.lt.s32.totalorder %s282, 7
        %s284 = scalar_select %p283, %s282, 7
        %s285 = smul.u32 128, %s284
        %p286 = scmp.lt.s32.totalorder %s281, 24
        %s287 = scalar_select %p286, %s281, 24
        %s288 = smul.addr %s287, 8
        %s289 = scalar_lea.vmem %s0, %s288
        %s290 = smul.u32 7, %s18
        %s291 = ssub.s32 25, %s290
        %p292 = scmp.lt.s32.totalorder %s291, 7
        %s293 = scalar_select %p292, %s291, 7
        %s294 = smul.u32 128, %s293
        %s295 = smul.u32 7, %s18
        %s296 = ssub.s32 25, %s295
        %p297 = scmp.lt.s32.totalorder %s296, 7
        %s298 = scalar_select %p297, %s296, 7
        %s299 = smul.u32 128, %s298
        %v300 = vld [vmem:[%s289] sm:$0xff]
        %v301 = vld [vmem:[%s289 + $0x8] sm:$0xff]
        %v302 = vld [vmem:[%s289 + $0x10] sm:$0xff]
        %v303 = vld [vmem:[%s289 + $0x18] sm:$0xff]
        %v304 = vld [vmem:[%s289 + $0x20] sm:$0xff]
        %v305 = vld [vmem:[%s289 + $0x28] sm:$0xff]
        %v306 = vld [vmem:[%s289 + $0x30] sm:$0xff]
        %v307 = vld [vmem:[%s1] sm:$0xff]
        %v308 = vld [vmem:[%s1 + $0x8] sm:$0xff]
        %v309 = vld [vmem:[%s1 + $0x10] sm:$0xff]
        %v310 = vld [vmem:[%s1 + $0x18] sm:$0xff]
        %v311 = vld [vmem:[%s1 + $0x20] sm:$0xff]
        %v312 = vld [vmem:[%s1 + $0x28] sm:$0xff]
        %v313 = vld [vmem:[%s1 + $0x30] sm:$0xff]
        %v314 = vld [vmem:[%s1 + $0x38] sm:$0xff]
        %v315 = vld [vmem:[%s2] sm:$0x3]
        %v317 = vlaneseq
        %v318 = vshrl.u32 %v317, 7
        %v319 = vsub.s32 0, %v318
        %v320 = vrot.slane %v315, %v319
        %v321 = vlaneseq
        %v322 = vshrl.u32 %v321, 7
        %v323 = vsub.s32 1, %v322
        %v324 = vrot.slane %v315, %v323
        %vm327 = vcmask 261120
        %v329 = vsel %vm327, %v300, 0
        %v332 = vsel %vm327, %v301, 0
        %v335 = vsel %vm327, %v302, 0
        %v338 = vsel %vm327, %v303, 0
        %v341 = vsel %vm327, %v304, 0
        %v344 = vsel %vm327, %v305, 0
        %v347 = vsel %vm327, %v306, 0
        %349 = vmatprep.subr.mxu0 %v308
        %350 = vmatpush1.msra.mxu0 %v307
        %351 = vmatprep.subr.mxu0 %v310
        %352 = vmatpush1.msra.mxu0 %v309
        %353 = vmatprep.subr.mxu0 %v312
        %354 = vmatpush1.msra.mxu0 %v311
        %355 = vmatprep.subr.mxu0 %v314
        %356 = vmatpush1.msra.mxu0 %v313
        %357 = vmatprep.subr.mxu0 0.0
        %358 = vmatpush1.msra.mxu0 0.0
        %359 = vmatprep.subr.mxu0 0.0
        %360 = vmatpush1.msra.mxu0 0.0
        %361 = vmatprep.subr.mxu0 0.0
        %362 = vmatpush1.msra.mxu0 0.0
        %363 = vmatprep.subr.mxu0 0.0
        %364 = vmatpush1.msra.mxu0 0.0
        %365 = vmatprep.subr.mxu0 0.0
        %366 = vmatpush1.msra.mxu0 0.0
        %367 = vmatprep.subr.mxu0 0.0
        %368 = vmatpush1.msra.mxu0 0.0
        %369 = vmatprep.subr.mxu0 0.0
        %370 = vmatpush1.msra.mxu0 0.0
        %371 = vmatprep.subr.mxu0 0.0
        %372 = vmatpush1.msra.mxu0 0.0
        %373 = vmatprep.subr.mxu0 0.0
        %374 = vmatpush1.msra.mxu0 0.0
        %375 = vmatprep.subr.mxu0 0.0
        %376 = vmatpush1.msra.mxu0 0.0
        %377 = vmatprep.subr.mxu0 0.0
        %378 = vmatpush1.msra.mxu0 0.0
        %379 = vmatprep.subr.mxu0 0.0
        %380 = vmatpush1.msra.mxu0 0.0
        %381 = vmatprep.subr.mxu0 0.0
        %382 = vmatpush1.msra.mxu0 0.0
        %383 = vmatprep.subr.mxu0 0.0
        %384 = vmatpush1.msra.mxu0 0.0
        %385 = vmatprep.subr.mxu0 0.0
        %386 = vmatpush1.msra.mxu0 0.0
        %387 = vmatprep.subr.mxu0 0.0
        %388 = vmatpush1.msra.mxu0 0.0
        %389 = vmatprep.subr.mxu0 0.0
        %390 = vmatpush1.msra.mxu0 0.0
        %391 = vmatprep.subr.mxu0 0.0
        %392 = vmatpush1.msra.mxu0 0.0
        %393 = vmatprep.subr.mxu0 0.0
        %394 = vmatpush1.msra.mxu0 0.0
        %395 = vmatprep.subr.mxu0 0.0
        %396 = vmatpush1.msra.mxu0 0.0
        %397 = vmatprep.subr.mxu0 0.0
        %398 = vmatpush1.msra.mxu0 0.0
        %399 = vmatprep.subr.mxu0 0.0
        %400 = vmatpush1.msra.mxu0 0.0
        %401 = vmatprep.subr.mxu0 0.0
        %402 = vmatpush1.msra.mxu0 0.0
        %403 = vmatprep.subr.mxu0 0.0
        %404 = vmatpush1.msra.mxu0 0.0
        %405 = vmatprep.subr.mxu0 0.0
        %406 = vmatpush1.msra.mxu0 0.0
        %407 = vmatprep.subr.mxu0 0.0
        %408 = vmatpush1.msra.mxu0 0.0
        %409 = vmatprep.subr.mxu0 0.0
        %410 = vmatpush1.msra.mxu0 0.0
        %411 = vmatprep.subr.mxu0 0.0
        %412 = vmatpush1.msra.mxu0 0.0
        %413 = vmatprep.mubr.f32.mxu0 0.0
        %414 = vmatmul.mubr.f32.gmra.mrb[0].mxu0 %v329
        %v415 = vpop.f32.mrb[0].mxu0
        %v416 = vadd.f32 %v320, %v415
        %v417 = vpop.f32.mrb[0].mxu0
        %v418 = vadd.f32 %v324, %v417
        %419 = vmatprep.mubr.f32.mxu0 0.0
        %420 = vmatmul.mubr.f32.gmra.mrb[0].mxu0 %v332
        %v421 = vpop.f32.mrb[0].mxu0
        %v422 = vadd.f32 %v320, %v421
        %v423 = vpop.f32.mrb[0].mxu0
        %v424 = vadd.f32 %v324, %v423
        %425 = vmatprep.mubr.f32.mxu0 0.0
        %426 = vmatmul.mubr.f32.gmra.mrb[0].mxu0 %v335
        %v427 = vpop.f32.mrb[0].mxu0
        %v428 = vadd.f32 %v320, %v427
        %v429 = vpop.f32.mrb[0].mxu0
        %v430 = vadd.f32 %v324, %v429
        %431 = vmatprep.mubr.f32.mxu0 0.0
        %432 = vmatmul.mubr.f32.gmra.mrb[0].mxu0 %v338
        %v433 = vpop.f32.mrb[0].mxu0
        %v434 = vadd.f32 %v320, %v433
        %v435 = vpop.f32.mrb[0].mxu0
        %v436 = vadd.f32 %v324, %v435
        %437 = vmatprep.mubr.f32.mxu0 0.0
        %438 = vmatmul.mubr.f32.gmra.mrb[0].mxu0 %v341
        %v439 = vpop.f32.mrb[0].mxu0
        %v440 = vadd.f32 %v320, %v439
        %v441 = vpop.f32.mrb[0].mxu0
        %v442 = vadd.f32 %v324, %v441
        %443 = vmatprep.mubr.f32.mxu0 0.0
        %444 = vmatmul.mubr.f32.gmra.mrb[0].mxu0 %v344
        %v445 = vpop.f32.mrb[0].mxu0
        %v446 = vadd.f32 %v320, %v445
        %v447 = vpop.f32.mrb[0].mxu0
        %v448 = vadd.f32 %v324, %v447
        %449 = vmatprep.mubr.f32.mxu0 0.0
        %450 = vmatmul.mubr.f32.gmra.mrb[0].mxu0 %v347
        %v451 = vpop.f32.mrb[0].mxu0
        %v452 = vadd.f32 %v320, %v451
        %v453 = vpop.f32.mrb[0].mxu0
        %v454 = vadd.f32 %v324, %v453
        %455 = vdwg.mxu0
        %v456 = vmax.f32 %v416, 0.0
        %v457 = vmax.f32 %v418, 0.0
        %v458 = vmax.f32 %v422, 0.0
        %v459 = vmax.f32 %v424, 0.0
        %v460 = vmax.f32 %v428, 0.0
        %v461 = vmax.f32 %v430, 0.0
        %v462 = vmax.f32 %v434, 0.0
        %v463 = vmax.f32 %v436, 0.0
        %v464 = vmax.f32 %v440, 0.0
        %v465 = vmax.f32 %v442, 0.0
        %v466 = vmax.f32 %v446, 0.0
        %v467 = vmax.f32 %v448, 0.0
        %v468 = vmax.f32 %v452, 0.0
        %v469 = vmax.f32 %v454, 0.0
        %v470 = vld [vmem:[%s3] sm:$0xff]
        %v471 = vld [vmem:[%s3 + $0x8] sm:$0xff]
        %v472 = vld [vmem:[%s3 + $0x10] sm:$0xff]
        %v473 = vld [vmem:[%s3 + $0x18] sm:$0xff]
        %v474 = vld [vmem:[%s3 + $0x20] sm:$0xff]
        %v475 = vld [vmem:[%s3 + $0x28] sm:$0xff]
        %v476 = vld [vmem:[%s3 + $0x30] sm:$0xff]
        %v477 = vld [vmem:[%s3 + $0x38] sm:$0xff]
        %v478 = vld [vmem:[%s3 + $0x40] sm:$0xff]
        %v479 = vld [vmem:[%s3 + $0x48] sm:$0xff]
        %v480 = vld [vmem:[%s3 + $0x50] sm:$0xff]
        %v481 = vld [vmem:[%s3 + $0x58] sm:$0xff]
        %v482 = vld [vmem:[%s3 + $0x60] sm:$0xff]
        %v483 = vld [vmem:[%s3 + $0x68] sm:$0xff]
        %v484 = vld [vmem:[%s3 + $0x70] sm:$0xff]
        %v485 = vld [vmem:[%s3 + $0x78] sm:$0xff]
        %v486 = vld [vmem:[%s3 + $0x80] sm:$0xff]
        %v487 = vld [vmem:[%s3 + $0x88] sm:$0xff]
        %v488 = vld [vmem:[%s3 + $0x90] sm:$0xff]
        %v489 = vld [vmem:[%s3 + $0x98] sm:$0xff]
        %v490 = vld [vmem:[%s3 + $0xa0] sm:$0xff]
        %v491 = vld [vmem:[%s3 + $0xa8] sm:$0xff]
        %v492 = vld [vmem:[%s3 + $0xb0] sm:$0xff]
        %v493 = vld [vmem:[%s3 + $0xb8] sm:$0xff]
        %v494 = vld [vmem:[%s3 + $0xc0] sm:$0xff]
        %v495 = vld [vmem:[%s3 + $0xc8] sm:$0xff]
        %v496 = vld [vmem:[%s3 + $0xd0] sm:$0xff]
        %v497 = vld [vmem:[%s3 + $0xd8] sm:$0xff]
        %v498 = vld [vmem:[%s3 + $0xe0] sm:$0xff]
        %v499 = vld [vmem:[%s3 + $0xe8] sm:$0xff]
        %v500 = vld [vmem:[%s3 + $0xf0] sm:$0xff]
        %v501 = vld [vmem:[%s3 + $0xf8] sm:$0xff]
        %v502 = vld [vmem:[%s4] sm:$0x1]
        %v504 = vlaneseq
        %v505 = vshrl.u32 %v504, 7
        %v506 = vsub.s32 0, %v505
        %v507 = vrot.slane %v502, %v506
        %509 = vmatprep.subr.mxu0 0.0
        %510 = vmatpush1.msra.mxu0 %v470
        %511 = vmatprep.subr.mxu0 0.0
        %512 = vmatpush1.msra.mxu0 %v471
        %513 = vmatprep.subr.mxu0 0.0
        %514 = vmatpush1.msra.mxu0 %v472
        %515 = vmatprep.subr.mxu0 0.0
        %516 = vmatpush1.msra.mxu0 %v473
        %517 = vmatprep.subr.mxu0 0.0
        %518 = vmatpush1.msra.mxu0 %v474
        %519 = vmatprep.subr.mxu0 0.0
        %520 = vmatpush1.msra.mxu0 %v475
        %521 = vmatprep.subr.mxu0 0.0
        %522 = vmatpush1.msra.mxu0 %v476
        %523 = vmatprep.subr.mxu0 0.0
        %524 = vmatpush1.msra.mxu0 %v477
        %525 = vmatprep.subr.mxu0 0.0
        %526 = vmatpush1.msra.mxu0 %v478
        %527 = vmatprep.subr.mxu0 0.0
        %528 = vmatpush1.msra.mxu0 %v479
        %529 = vmatprep.subr.mxu0 0.0
        %530 = vmatpush1.msra.mxu0 %v480
        %531 = vmatprep.subr.mxu0 0.0
        %532 = vmatpush1.msra.mxu0 %v481
        %533 = vmatprep.subr.mxu0 0.0
        %534 = vmatpush1.msra.mxu0 %v482
        %535 = vmatprep.subr.mxu0 0.0
        %536 = vmatpush1.msra.mxu0 %v483
        %537 = vmatprep.subr.mxu0 0.0
        %538 = vmatpush1.msra.mxu0 %v484
        %539 = vmatprep.subr.mxu0 0.0
        %540 = vmatpush1.msra.mxu0 %v485
        %541 = vmatprep.subr.mxu0 0.0
        %542 = vmatpush1.msra.mxu0 %v486
        %543 = vmatprep.subr.mxu0 0.0
        %544 = vmatpush1.msra.mxu0 %v487
        %545 = vmatprep.subr.mxu0 0.0
        %546 = vmatpush1.msra.mxu0 %v488
        %547 = vmatprep.subr.mxu0 0.0
        %548 = vmatpush1.msra.mxu0 %v489
        %549 = vmatprep.subr.mxu0 0.0
        %550 = vmatpush1.msra.mxu0 %v490
        %551 = vmatprep.subr.mxu0 0.0
        %552 = vmatpush1.msra.mxu0 %v491
        %553 = vmatprep.subr.mxu0 0.0
        %554 = vmatpush1.msra.mxu0 %v492
        %555 = vmatprep.subr.mxu0 0.0
        %556 = vmatpush1.msra.mxu0 %v493
        %557 = vmatprep.subr.mxu0 0.0
        %558 = vmatpush1.msra.mxu0 %v494
        %559 = vmatprep.subr.mxu0 0.0
        %560 = vmatpush1.msra.mxu0 %v495
        %561 = vmatprep.subr.mxu0 0.0
        %562 = vmatpush1.msra.mxu0 %v496
        %563 = vmatprep.subr.mxu0 0.0
        %564 = vmatpush1.msra.mxu0 %v497
        %565 = vmatprep.subr.mxu0 0.0
        %566 = vmatpush1.msra.mxu0 %v498
        %567 = vmatprep.subr.mxu0 0.0
        %568 = vmatpush1.msra.mxu0 %v499
        %569 = vmatprep.subr.mxu0 0.0
        %570 = vmatpush1.msra.mxu0 %v500
        %571 = vmatprep.subr.mxu0 0.0
        %572 = vmatpush1.msra.mxu0 %v501
        %573 = vmatprep.mubr.f32.mxu0 %v457
        %574 = vmatmul.mubr.f32.gmra.mrb[0].mxu0 %v456
        %v575 = vpop.f32.mrb[0].mxu0
        %v576 = vadd.f32 %v507, %v575
        %v577 = vpop.f32.mrb[0].mxu0
        %578 = vmatprep.mubr.f32.mxu0 %v459
        %579 = vmatmul.mubr.f32.gmra.mrb[0].mxu0 %v458
        %v580 = vpop.f32.mrb[0].mxu0
        %v581 = vadd.f32 %v507, %v580
        %v582 = vpop.f32.mrb[0].mxu0
        %583 = vmatprep.mubr.f32.mxu0 %v461
        %584 = vmatmul.mubr.f32.gmra.mrb[0].mxu0 %v460
        %v585 = vpop.f32.mrb[0].mxu0
        %v586 = vadd.f32 %v507, %v585
        %v587 = vpop.f32.mrb[0].mxu0
        %588 = vmatprep.mubr.f32.mxu0 %v463
        %589 = vmatmul.mubr.f32.gmra.mrb[0].mxu0 %v462
        %v590 = vpop.f32.mrb[0].mxu0
        %v591 = vadd.f32 %v507, %v590
        %v592 = vpop.f32.mrb[0].mxu0
        %593 = vmatprep.mubr.f32.mxu0 %v465
        %594 = vmatmul.mubr.f32.gmra.mrb[0].mxu0 %v464
        %v595 = vpop.f32.mrb[0].mxu0
        %v596 = vadd.f32 %v507, %v595
        %v597 = vpop.f32.mrb[0].mxu0
        %598 = vmatprep.mubr.f32.mxu0 %v467
        %599 = vmatmul.mubr.f32.gmra.mrb[0].mxu0 %v466
        %v600 = vpop.f32.mrb[0].mxu0
        %v601 = vadd.f32 %v507, %v600
        %v602 = vpop.f32.mrb[0].mxu0
        %603 = vmatprep.mubr.f32.mxu0 %v469
        %604 = vmatmul.mubr.f32.gmra.mrb[0].mxu0 %v468
        %v605 = vpop.f32.mrb[0].mxu0
        %v606 = vadd.f32 %v507, %v605
        %v607 = vpop.f32.mrb[0].mxu0
        %608 = vdwg.mxu0
        %v609 = vmax.f32 %v576, 0.0
        %v610 = vmax.f32 %v581, 0.0
        %v611 = vmax.f32 %v586, 0.0
        %v612 = vmax.f32 %v591, 0.0
        %v613 = vmax.f32 %v596, 0.0
        %v614 = vmax.f32 %v601, 0.0
        %v615 = vmax.f32 %v606, 0.0
        %v616 = vld [vmem:[%s5] sm:$0xff]
        %v617 = vld [vmem:[%s5 + $0x8] sm:$0xff]
        %v618 = vld [vmem:[%s5 + $0x10] sm:$0xff]
        %v619 = vld [vmem:[%s5 + $0x18] sm:$0xff]
        %v620 = vld [vmem:[%s5 + $0x20] sm:$0xff]
        %v621 = vld [vmem:[%s5 + $0x28] sm:$0xff]
        %v622 = vld [vmem:[%s5 + $0x30] sm:$0xff]
        %v623 = vld [vmem:[%s5 + $0x38] sm:$0xff]
        %v624 = vld [vmem:[%s5 + $0x40] sm:$0xff]
        %v625 = vld [vmem:[%s5 + $0x48] sm:$0xff]
        %v626 = vld [vmem:[%s5 + $0x50] sm:$0xff]
        %v627 = vld [vmem:[%s5 + $0x58] sm:$0xff]
        %v628 = vld [vmem:[%s5 + $0x60] sm:$0xff]
        %v629 = vld [vmem:[%s5 + $0x68] sm:$0xff]
        %v630 = vld [vmem:[%s5 + $0x70] sm:$0xff]
        %v631 = vld [vmem:[%s5 + $0x78] sm:$0xff]
        %v632 = vld [vmem:[%s6] sm:$0x1]
        %v634 = vlaneseq
        %v635 = vshrl.u32 %v634, 7
        %v636 = vsub.s32 0, %v635
        %v637 = vrot.slane %v632, %v636
        %639 = vmatprep.subr.mxu0 0.0
        %640 = vmatpush1.msra.mxu0 %v616
        %641 = vmatprep.subr.mxu0 0.0
        %642 = vmatpush1.msra.mxu0 %v617
        %643 = vmatprep.subr.mxu0 0.0
        %644 = vmatpush1.msra.mxu0 %v618
        %645 = vmatprep.subr.mxu0 0.0
        %646 = vmatpush1.msra.mxu0 %v619
        %647 = vmatprep.subr.mxu0 0.0
        %648 = vmatpush1.msra.mxu0 %v620
        %649 = vmatprep.subr.mxu0 0.0
        %650 = vmatpush1.msra.mxu0 %v621
        %651 = vmatprep.subr.mxu0 0.0
        %652 = vmatpush1.msra.mxu0 %v622
        %653 = vmatprep.subr.mxu0 0.0
        %654 = vmatpush1.msra.mxu0 %v623
        %655 = vmatprep.subr.mxu0 0.0
        %656 = vmatpush1.msra.mxu0 %v624
        %657 = vmatprep.subr.mxu0 0.0
        %658 = vmatpush1.msra.mxu0 %v625
        %659 = vmatprep.subr.mxu0 0.0
        %660 = vmatpush1.msra.mxu0 %v626
        %661 = vmatprep.subr.mxu0 0.0
        %662 = vmatpush1.msra.mxu0 %v627
        %663 = vmatprep.subr.mxu0 0.0
        %664 = vmatpush1.msra.mxu0 %v628
        %665 = vmatprep.subr.mxu0 0.0
        %666 = vmatpush1.msra.mxu0 %v629
        %667 = vmatprep.subr.mxu0 0.0
        %668 = vmatpush1.msra.mxu0 %v630
        %669 = vmatprep.subr.mxu0 0.0
        %670 = vmatpush1.msra.mxu0 %v631
        %671 = vmatprep.subr.mxu0 0.0
        %672 = vmatpush1.msra.mxu0 0.0
        %673 = vmatprep.subr.mxu0 0.0
        %674 = vmatpush1.msra.mxu0 0.0
        %675 = vmatprep.subr.mxu0 0.0
        %676 = vmatpush1.msra.mxu0 0.0
        %677 = vmatprep.subr.mxu0 0.0
        %678 = vmatpush1.msra.mxu0 0.0
        %679 = vmatprep.subr.mxu0 0.0
        %680 = vmatpush1.msra.mxu0 0.0
        %681 = vmatprep.subr.mxu0 0.0
        %682 = vmatpush1.msra.mxu0 0.0
        %683 = vmatprep.subr.mxu0 0.0
        %684 = vmatpush1.msra.mxu0 0.0
        %685 = vmatprep.subr.mxu0 0.0
        %686 = vmatpush1.msra.mxu0 0.0
        %687 = vmatprep.subr.mxu0 0.0
        %688 = vmatpush1.msra.mxu0 0.0
        %689 = vmatprep.subr.mxu0 0.0
        %690 = vmatpush1.msra.mxu0 0.0
        %691 = vmatprep.subr.mxu0 0.0
        %692 = vmatpush1.msra.mxu0 0.0
        %693 = vmatprep.subr.mxu0 0.0
        %694 = vmatpush1.msra.mxu0 0.0
        %695 = vmatprep.subr.mxu0 0.0
        %696 = vmatpush1.msra.mxu0 0.0
        %697 = vmatprep.subr.mxu0 0.0
        %698 = vmatpush1.msra.mxu0 0.0
        %699 = vmatprep.subr.mxu0 0.0
        %700 = vmatpush1.msra.mxu0 0.0
        %701 = vmatprep.subr.mxu0 0.0
        %702 = vmatpush1.msra.mxu0 0.0
        %703 = vmatprep.mubr.f32.mxu0 0.0
        %704 = vmatmul.mubr.f32.gmra.mrb[0].mxu0 %v609
        %v705 = vpop.f32.mrb[0].mxu0
        %v706 = vadd.f32 %v637, %v705
        %v707 = vpop.f32.mrb[0].mxu0
        %708 = vmatprep.mubr.f32.mxu0 0.0
        %709 = vmatmul.mubr.f32.gmra.mrb[0].mxu0 %v610
        %v710 = vpop.f32.mrb[0].mxu0
        %v711 = vadd.f32 %v637, %v710
        %v712 = vpop.f32.mrb[0].mxu0
        %713 = vmatprep.mubr.f32.mxu0 0.0
        %714 = vmatmul.mubr.f32.gmra.mrb[0].mxu0 %v611
        %v715 = vpop.f32.mrb[0].mxu0
        %v716 = vadd.f32 %v637, %v715
        %v717 = vpop.f32.mrb[0].mxu0
        %718 = vmatprep.mubr.f32.mxu0 0.0
        %719 = vmatmul.mubr.f32.gmra.mrb[0].mxu0 %v612
        %v720 = vpop.f32.mrb[0].mxu0
        %v721 = vadd.f32 %v637, %v720
        %v722 = vpop.f32.mrb[0].mxu0
        %723 = vmatprep.mubr.f32.mxu0 0.0
        %724 = vmatmul.mubr.f32.gmra.mrb[0].mxu0 %v613
        %v725 = vpop.f32.mrb[0].mxu0
        %v726 = vadd.f32 %v637, %v725
        %v727 = vpop.f32.mrb[0].mxu0
        %728 = vmatprep.mubr.f32.mxu0 0.0
        %729 = vmatmul.mubr.f32.gmra.mrb[0].mxu0 %v614
        %v730 = vpop.f32.mrb[0].mxu0
        %v731 = vadd.f32 %v637, %v730
        %v732 = vpop.f32.mrb[0].mxu0
        %733 = vmatprep.mubr.f32.mxu0 0.0
        %734 = vmatmul.mubr.f32.gmra.mrb[0].mxu0 %v615
        %v735 = vpop.f32.mrb[0].mxu0
        %v736 = vadd.f32 %v637, %v735
        %v737 = vpop.f32.mrb[0].mxu0
        %738 = vdwg.mxu0
        %vm739 = vcmask 130048
        %740 = vst.msk [vmem:[%s280] sm:$0xff] %vm739, %v706
        %741 = vst.msk [vmem:[%s280 + $0x8] sm:$0xff] %vm739, %v711
        %742 = vst.msk [vmem:[%s280 + $0x10] sm:$0xff] %vm739, %v716
        %743 = vst.msk [vmem:[%s280 + $0x18] sm:$0xff] %vm739, %v721
        %744 = vst.msk [vmem:[%s280 + $0x20] sm:$0xff] %vm739, %v726
        %745 = vst.msk [vmem:[%s280 + $0x28] sm:$0xff] %vm739, %v731
        %746 = vst.msk [vmem:[%s280 + $0x30] sm:$0xff] %vm739, %v736
        %s747 = sand.u32 %s178, 1
        %s748 = sand.u32 %s178, 1
        %s749 = smul.addr %s748, 56
        %s750 = scalar_lea.vmem [#allocation2], %s749
        // Predicated region
        $region49: #{mlp_forward.1} parent=47 // pred_check
          %p751 = pneg %p188
        $region50: #{mlp_forward.1} parent=47 // pred_check_branch
          %753 = sbr.rel (%p751) target = $region52
        $region51: #{mlp_forward.1} parent=47 // pred_region
          %s754 = smul.u32 7, %s18
          %s755 = ssub.s32 25, %s754
          %p756 = scmp.lt.s32.totalorder %s755, 7
          %s757 = scalar_select %p756, %s755, 7
          %s758 = smul.u32 128, %s757
          %p759 = scmp.ne.s32.totalorder 0, %s758
          %s760 = smul.addr %s754, 8
          %s761 = scalar_lea.vmem %s7, %s760
          // Predicated region
          $region53: #{mlp_forward.1} parent=51 // pred_check
            %p762 = pneg %p759
          $region54: #{mlp_forward.1} parent=51 // pred_check_branch
            %764 = sbr.rel (%p762) target = $region56
          $region55: #{mlp_forward.1} parent=51 // pred_region
            // Predicated region
            $region57: #{mlp_forward.1} parent=55 // pred_check
              _
            $region58: #{mlp_forward.1} parent=55 // pred_check_branch
              %766 = sbr.rel (0) target = $region60
            $region59: #{mlp_forward.1} parent=55 // pred_region
              // Predicated region
              $region79: #{mlp_forward.1} parent=59 // pred_check
                _
              $region80: #{mlp_forward.1} parent=59 // pred_check_branch
                %828 = sbr.rel (0) target = $region82
              $region81: #{mlp_forward.1} parent=59 // pred_region
                %s829 = sdiv.u32.pop %s757, 7
                %s830 = srem.u32.pop %s757, 7
                // While loop
                $region83: #{mlp_forward.1} parent=81 // loop_pre_header
                  _
                $region84: #{mlp_forward.1} parent=81 // loop_header
                  %s832 = sphi 0, %s834
                  %p833 = scmp.ge.s32.totalorder %s832, %s829
                  %s837 = sphi 0, %s856
                  %s838 = sphi %s750, %s859
                  %s839 = sphi %s761, %s860
                $region85: #{mlp_forward.1} parent=81 // loop_header_branch
                  %836 = sbr.rel (%p833) target = $region89
                $region86: #{mlp_forward.1} parent=81 // loop_body
                  %v840 = vld [vmem:[%s838] sm:$0xff]
                  %841 = vst [vmem:[%s839] sm:$0xff] %v840
                  %v842 = vld [vmem:[%s838 + $0x8] sm:$0xff]
                  %843 = vst [vmem:[%s839 + $0x8] sm:$0xff] %v842
                  %v844 = vld [vmem:[%s838 + $0x10] sm:$0xff]
                  %845 = vst [vmem:[%s839 + $0x10] sm:$0xff] %v844
                  %v846 = vld [vmem:[%s838 + $0x18] sm:$0xff]
                  %847 = vst [vmem:[%s839 + $0x18] sm:$0xff] %v846
                  %v848 = vld [vmem:[%s838 + $0x20] sm:$0xff]
                  %849 = vst [vmem:[%s839 + $0x20] sm:$0xff] %v848
                  %v850 = vld [vmem:[%s838 + $0x28] sm:$0xff]
                  %851 = vst [vmem:[%s839 + $0x28] sm:$0xff] %v850
                  %v852 = vld [vmem:[%s838 + $0x30] sm:$0xff]
                  %853 = vst [vmem:[%s839 + $0x30] sm:$0xff] %v852
                  %s854 = sadd.s32 1, %s837
                  %p855 = scmp.ge.s32.totalorder %s854, %s829
                  %s856 = scalar_select %p855, 0, %s854
                  %s857 = smul.u32 %s856, 56
                  %s858 = smul.u32 %s856, 56
                  %s859 = scalar_lea.vmem %s750, %s857 [#allocation2]
                  %s860 = scalar_lea.vmem %s761, %s858
                $region87: #{mlp_forward.1} parent=81 // loop_footer
                  %s834 = sadd.s32 %s832, 1
                $region88: #{mlp_forward.1} parent=81 // loop_footer_branch
                  %831 = sbr.rel target = $region84
                $region89: #{mlp_forward.1} parent=81 // loop_exit
                  _
                %s861 = sdiv.u32.pop %s757, 7
                %s862 = srem.u32.pop %s757, 7
                %s863 = smul.u32 %s861, 7
                %s864 = smul.u32 8, %s863
                %s865 = scalar_lea.vmem %s750, %s864 [#allocation2]
                %s866 = smul.u32 8, %s863
                %s867 = scalar_lea.vmem %s761, %s866
                // While loop
                $region90: #{mlp_forward.1} parent=81 // loop_pre_header
                  _
                $region91: #{mlp_forward.1} parent=81 // loop_header
                  %s869 = sphi 0, %s871
                  %p870 = scmp.ge.s32.totalorder %s869, %s862
                  %s874 = sphi 0, %s881
                  %s875 = sphi %s865, %s884
                  %s876 = sphi %s867, %s885
                $region92: #{mlp_forward.1} parent=81 // loop_header_branch
                  %873 = sbr.rel (%p870) target = $region96
                $region93: #{mlp_forward.1} parent=81 // loop_body
                  %v877 = vld [vmem:[%s875] sm:$0xff]
                  %878 = vst [vmem:[%s876] sm:$0xff] %v877
                  %s879 = sadd.s32 1, %s874
                  %p880 = scmp.ge.s32.totalorder %s879, %s862
                  %s881 = scalar_select %p880, 0, %s879
                  %s882 = smul.u32 %s881, 8
                  %s883 = smul.u32 %s881, 8
                  %s884 = scalar_lea.vmem %s865, %s882 [#allocation2]
                  %s885 = scalar_lea.vmem %s867, %s883
                $region94: #{mlp_forward.1} parent=81 // loop_footer
                  %s871 = sadd.s32 %s869, 1
                $region95: #{mlp_forward.1} parent=81 // loop_footer_branch
                  %868 = sbr.rel target = $region91
                $region96: #{mlp_forward.1} parent=81 // loop_exit
                  _
              $region82: #{mlp_forward.1} parent=59 // pred_fallthru
                _
              // Predicated region
              $region97: #{mlp_forward.1} parent=59 // pred_check
                _
              $region98: #{mlp_forward.1} parent=59 // pred_check_branch
                %887 = sbr.rel target = $region100
              $region99: #{mlp_forward.1} parent=59 // pred_region
                _
              $region100: #{mlp_forward.1} parent=59 // pred_fallthru
                _
            $region60: #{mlp_forward.1} parent=55 // pred_fallthru
              _
            // Predicated region
            $region61: #{mlp_forward.1} parent=55 // pred_check
              _
            $region62: #{mlp_forward.1} parent=55 // pred_check_branch
              %768 = sbr.rel target = $region64
            $region63: #{mlp_forward.1} parent=55 // pred_region
              %s770 = sdiv.u32.pop %s757, 7
              %s771 = srem.u32.pop %s757, 7
              // While loop
              $region65: #{mlp_forward.1} parent=63 // loop_pre_header
                _
              $region66: #{mlp_forward.1} parent=63 // loop_header
                %s773 = sphi 0, %s775
                %p774 = scmp.ge.s32.totalorder %s773, %s770
                %s778 = sphi 0, %s797
                %s779 = sphi %s750, %s800
                %s780 = sphi %s761, %s801
              $region67: #{mlp_forward.1} parent=63 // loop_header_branch
                %777 = sbr.rel (%p774) target = $region71
              $region68: #{mlp_forward.1} parent=63 // loop_body
                %v781 = vld [vmem:[%s779] sm:$0xff]
                %782 = vst [vmem:[%s780] sm:$0xff] %v781
                %v783 = vld [vmem:[%s779 + $0x8] sm:$0xff]
                %784 = vst [vmem:[%s780 + $0x8] sm:$0xff] %v783
                %v785 = vld [vmem:[%s779 + $0x10] sm:$0xff]
                %786 = vst [vmem:[%s780 + $0x10] sm:$0xff] %v785
                %v787 = vld [vmem:[%s779 + $0x18] sm:$0xff]
                %788 = vst [vmem:[%s780 + $0x18] sm:$0xff] %v787
                %v789 = vld [vmem:[%s779 + $0x20] sm:$0xff]
                %790 = vst [vmem:[%s780 + $0x20] sm:$0xff] %v789
                %v791 = vld [vmem:[%s779 + $0x28] sm:$0xff]
                %792 = vst [vmem:[%s780 + $0x28] sm:$0xff] %v791
                %v793 = vld [vmem:[%s779 + $0x30] sm:$0xff]
                %794 = vst [vmem:[%s780 + $0x30] sm:$0xff] %v793
                %s795 = sadd.s32 1, %s778
                %p796 = scmp.ge.s32.totalorder %s795, %s770
                %s797 = scalar_select %p796, 0, %s795
                %s798 = smul.u32 %s797, 56
                %s799 = smul.u32 %s797, 56
                %s800 = scalar_lea.vmem %s750, %s798 [#allocation2]
                %s801 = scalar_lea.vmem %s761, %s799
              $region69: #{mlp_forward.1} parent=63 // loop_footer
                %s775 = sadd.s32 %s773, 1
              $region70: #{mlp_forward.1} parent=63 // loop_footer_branch
                %772 = sbr.rel target = $region66
              $region71: #{mlp_forward.1} parent=63 // loop_exit
                _
              %s802 = sdiv.u32.pop %s757, 7
              %s803 = srem.u32.pop %s757, 7
              %s804 = smul.u32 %s802, 7
              %s805 = smul.u32 8, %s804
              %s806 = scalar_lea.vmem %s750, %s805 [#allocation2]
              %s807 = smul.u32 8, %s804
              %s808 = scalar_lea.vmem %s761, %s807
              // While loop
              $region72: #{mlp_forward.1} parent=63 // loop_pre_header
                _
              $region73: #{mlp_forward.1} parent=63 // loop_header
                %s810 = sphi 0, %s812
                %p811 = scmp.ge.s32.totalorder %s810, %s803
                %s815 = sphi 0, %s822
                %s816 = sphi %s806, %s825
                %s817 = sphi %s808, %s826
              $region74: #{mlp_forward.1} parent=63 // loop_header_branch
                %814 = sbr.rel (%p811) target = $region78
              $region75: #{mlp_forward.1} parent=63 // loop_body
                %v818 = vld [vmem:[%s816] sm:$0xff]
                %819 = vst [vmem:[%s817] sm:$0xff] %v818
                %s820 = sadd.s32 1, %s815
                %p821 = scmp.ge.s32.totalorder %s820, %s803
                %s822 = scalar_select %p821, 0, %s820
                %s823 = smul.u32 %s822, 8
                %s824 = smul.u32 %s822, 8
                %s825 = scalar_lea.vmem %s806, %s823 [#allocation2]
                %s826 = scalar_lea.vmem %s808, %s824
              $region76: #{mlp_forward.1} parent=63 // loop_footer
                %s812 = sadd.s32 %s810, 1
              $region77: #{mlp_forward.1} parent=63 // loop_footer_branch
                %809 = sbr.rel target = $region73
              $region78: #{mlp_forward.1} parent=63 // loop_exit
                _
            $region64: #{mlp_forward.1} parent=55 // pred_fallthru
              _
          $region56: #{mlp_forward.1} parent=51 // pred_fallthru
            _
          %888 = vnop
        $region52: #{mlp_forward.1} parent=47 // pred_fallthru
          _
      $region48: #{mlp_forward.1} parent=5 // pred_fallthru
        _
      %p889 = scmp.le.s32.totalorder 2, %s13
      // Predicated region
      $region101: #{mlp_forward.1} parent=5 // pred_check
        %p890 = pneg %p889
      $region102: #{mlp_forward.1} parent=5 // pred_check_branch
        %892 = sbr.rel (%p890) target = $region104
      $region103: #{mlp_forward.1} parent=5 // pred_region
        %s893 = ssub.s32 %s13, 2
        // Predicated region
        $region105: #{mlp_forward.1} parent=103 // pred_check
          %p894 = pneg %p194
        $region106: #{mlp_forward.1} parent=103 // pred_check_branch
          %896 = sbr.rel (%p894) target = $region108
        $region107: #{mlp_forward.1} parent=103 // pred_region
          %s897 = sand.u32 %s179, 1
          %s898 = sand.u32 %s179, 1
          %s899 = smul.addr %s898, 56
          %s900 = scalar_lea.vmem [#allocation2], %s899
        $region108: #{mlp_forward.1} parent=103 // pred_fallthru
          _
      $region104: #{mlp_forward.1} parent=5 // pred_fallthru
        _
    $region6: #{mlp_forward.1} parent=1 // loop_footer
      %s17 = sadd.s32 1, %s13
    $region7: #{mlp_forward.1} parent=1 // loop_footer_branch
      %12 = sbr.rel target = $region3
    $region8: #{mlp_forward.1} parent=1 // loop_exit
      _

</llo_original>
